<compile_context>
chip_gen: v5e
topology: v5e:2x2
jax: 0.10.0
libtpu: 0.0.40
codegen_flags: <defaults>
</compile_context>

<pallas_src>
import jax
import jax.numpy as jnp
from jax.experimental import pallas as pl
from jax.experimental.pallas import tpu as pltpu


# ---------------------------------------------------------------------------
# Helpers
# ---------------------------------------------------------------------------
def _round_up(v, m):
    return ((v + m - 1) // m) * m


def _pick_tile(dim, cap, align):
    """Fewest blocks of size <= cap, then the smallest aligned tile covering dim.

    Minimizes padding waste (e.g. B=600, cap=512 -> tm=304, Bp=608) while
    keeping the block count — and hence weight/activation re-reads — minimal.
    """
    n_blocks = -(-dim // cap)
    return _round_up(-(-dim // n_blocks), align)


def _pad2d(a, shape):
    pr = shape[0] - a.shape[0]
    pc = shape[1] - a.shape[1]
    if pr == 0 and pc == 0:
        return a
    return jnp.pad(a, ((0, pr), (0, pc)))


# ---------------------------------------------------------------------------
# Kernel factory: out = sum_s scale_s * (x_s @ w_s) + bias
#   * scales are Python floats -> trace-time constants (no extra HBM traffic).
#   * multi_k=False: single K block, write straight to o_ref (no accumulator).
#   * multi_k=True : f32 VMEM accumulator over the K grid axis, initialized
#                    with the broadcast bias at k==0, cast-out at k==last.
# ---------------------------------------------------------------------------
def _make_kernel(scales, multi_k):
    n = len(scales)

    def _partial_sum(refs):
        x_refs, w_refs = refs[:n], refs[n:2 * n]
        total = None
        for x_ref, w_ref, s in zip(x_refs, w_refs, scales):
            c = jnp.dot(x_ref[...], w_ref[...],
                        preferred_element_type=jnp.float32)
            if s != 1.0:
                c = c * jnp.float32(s)
            total = c if total is None else total + c
        return total

    if not multi_k:
        def kernel(*refs):
            b_ref, o_ref = refs[2 * n], refs[2 * n + 1]
            o_ref[...] = (_partial_sum(refs)
                          + b_ref[...].astype(jnp.float32)).astype(o_ref.dtype)
        return kernel

    def kernel(*refs):
        b_ref, o_ref, acc_ref = refs[2 * n], refs[2 * n + 1], refs[2 * n + 2]
        k = pl.program_id(2)

        @pl.when(k == 0)
        def _init():
            # Bias lives in the accumulator from the start -> no epilogue add.
            acc_ref[...] = jnp.broadcast_to(
                b_ref[...].astype(jnp.float32), acc_ref.shape)

        acc_ref[...] += _partial_sum(refs)

        @pl.when(k == pl.num_programs(2) - 1)
        def _finalize():
            o_ref[...] = acc_ref[...].astype(o_ref.dtype)

    return kernel


# ---------------------------------------------------------------------------
# Layer builder: all parameter-side work (bias fusion, weight padding, tile
# selection along K / Out) happens ONCE here, not per forward call.
# ---------------------------------------------------------------------------
def make_linear_layer(w_base, b_base, w_prior=None, b_prior=None, *,
                      prior_scale=1.0, posterior_scale=1.0,
                      tm_cap=512, tn_cap=512, tk_cap=1024,
                      vmem_limit_bytes=32 * 1024 * 1024):
    """w_*: [In, Out] (transposed from torch's [Out, In]); b_*: [Out]/[1,Out]/None.

    Returns forward(x, prior_x) -> [B, 1, Out], matching LinearLayer.forward.
    """
    prior_scale = float(prior_scale)
    posterior_scale = float(posterior_scale)
    use_prior = (prior_scale > 0) and (w_prior is not None)

    K, Out = w_base.shape
    dtype = w_base.dtype

    def _bias2d(b):
        if b is None:
            return jnp.zeros((1, Out), dtype)
        return jnp.reshape(b, (1, Out)).astype(dtype)

    # K / Out tiling is fixed by parameter shapes -> decided (and padded) once.
    tn = _pick_tile(Out, tn_cap, 128)
    tk = _pick_tile(K, tk_cap, 128)
    Op = _round_up(Out, tn)
    Kp = _round_up(K, tk)
    multi_k = (Kp // tk) > 1

    if use_prior:
        scales = (posterior_scale, prior_scale)
        weights = [_pad2d(w_base, (Kp, Op)), _pad2d(w_prior, (Kp, Op))]
        bias = _pad2d(posterior_scale * _bias2d(b_base)
                      + prior_scale * _bias2d(b_prior), (1, Op))
    else:
        # Faithful to torch: only basedmodel(x), no scaling, prior never read.
        scales = (1.0,)
        weights = [_pad2d(w_base, (Kp, Op))]
        bias = _pad2d(_bias2d(b_base), (1, Op))

    n_streams = len(scales)
    kernel = _make_kernel(scales, multi_k)
    itemsize = jnp.dtype(dtype).itemsize

    def forward(x, prior_x=None):
        assert x.shape[1] == K, (x.shape, K)
        B = x.shape[0]

        tm = _pick_tile(B, tm_cap, 8)          # f32 -> 8-sublane alignment
        Bp = _round_up(B, tm)
        tm_eff, tn_eff = tm, tn

        # v7x megacore: if both parallel axes collapsed to one block, split one
        # of them (when alignment allows) so the second TensorCore gets work.
        if Bp // tm_eff == 1 and Op // tn_eff == 1:
            if tn_eff >= 256 and tn_eff % 256 == 0:
                tn_eff //= 2
            elif tm_eff >= 16 and tm_eff % 16 == 0:
                tm_eff //= 2

        m_blocks, n_blocks, k_blocks = Bp // tm_eff, Op // tn_eff, Kp // tk

        # Per-call work on activations only (cheap, O(B*In)).
        xs = [_pad2d(x, (Bp, Kp))]
        if use_prior:
            xs.append(_pad2d(prior_x, (Bp, Kp)))

        if multi_k:
            grid = (m_blocks, n_blocks, k_blocks)
            x_spec = pl.BlockSpec((tm_eff, tk), lambda i, j, k: (i, k))
            w_spec = pl.BlockSpec((tk, tn_eff), lambda i, j, k: (k, j))
            b_spec = pl.BlockSpec((1, tn_eff), lambda i, j, k: (0, j))
            o_spec = pl.BlockSpec((tm_eff, tn_eff), lambda i, j, k: (i, j))
            scratch = [pltpu.VMEM((tm_eff, tn_eff), jnp.float32)]
            sems = ("parallel", "parallel", "arbitrary")
        else:
            grid = (m_blocks, n_blocks)
            x_spec = pl.BlockSpec((tm_eff, Kp), lambda i, j: (i, 0))
            w_spec = pl.BlockSpec((Kp, tn_eff), lambda i, j: (0, j))
            b_spec = pl.BlockSpec((1, tn_eff), lambda i, j: (0, j))
            o_spec = pl.BlockSpec((tm_eff, tn_eff), lambda i, j: (i, j))
            scratch = []
            sems = ("parallel", "parallel")

        cost = pl.CostEstimate(
            flops=2 * Bp * Kp * Op * n_streams,
            transcendentals=0,
            bytes_accessed=(n_streams * (Bp * Kp * n_blocks      # x re-read per N block
                                         + Kp * Op * m_blocks)   # w re-read per M block
                            + Op + Bp * Op) * itemsize,
        )

        out_p = pl.pallas_call(
            kernel,
            out_shape=jax.ShapeDtypeStruct((Bp, Op), x.dtype),
            grid_spec=pltpu.PrefetchScalarGridSpec(
                num_scalar_prefetch=0,
                grid=grid,
                in_specs=[x_spec] * n_streams + [w_spec] * n_streams + [b_spec],
                out_specs=o_spec,
                scratch_shapes=scratch,
            ),
            compiler_params=pltpu.CompilerParams(
                dimension_semantics=sems,
                vmem_limit_bytes=vmem_limit_bytes,
            ),
            cost_estimate=cost,
        )(*xs, *weights, bias)

        return out_p[:B, :Out][:, None, :]    # torch's .unsqueeze(1)

    return forward


def _xavier_normal(key, fan_in, fan_out, gain=1.0, dtype=jnp.float32):
    std = gain * (2.0 / (fan_in + fan_out)) ** 0.5
    # PyTorch stores (out, in); generate there then transpose to (in, out).
    w = std * jax.random.normal(key, (fan_out, fan_in), dtype=dtype)
    return w.T


if __name__ == "__main__":
    # Module hyper-params (small demo shapes, consistent with the module).
    in_features = 32
    out_features = 16
    batch = 2

    key = jax.random.PRNGKey(0)
    k_x, k_px, k_wb, k_wp = jax.random.split(key, 4)

    x = jax.random.normal(k_x, (batch, in_features), dtype=jnp.float32)
    prior_x = jax.random.normal(k_px, (batch, in_features), dtype=jnp.float32)

    # reset_parameters(): xavier_normal_(gain=1.0) weights, zero biases.
    w_base = _xavier_normal(k_wb, in_features, out_features)     # [In, Out]
    b_base = jnp.zeros((1, out_features), jnp.float32)
    w_prior = _xavier_normal(k_wp, in_features, out_features)    # [In, Out]
    b_prior = jnp.zeros((1, out_features), jnp.float32)

    # 1) prior_scale > 0, default scales (single-K-block fused kernel).
    fwd = make_linear_layer(w_base, b_base, w_prior, b_prior,
                            prior_scale=1.0, posterior_scale=1.0)
    out = jax.block_until_ready(fwd(x, prior_x))
    ref = ((x @ w_base + b_base) + (prior_x @ w_prior + b_prior))[:, None, :]
    assert out.shape == (batch, 1, out_features), out.shape
    assert jnp.allclose(out, ref, atol=1e-5, rtol=1e-5)

    # 2) Non-unit scales (exercises the in-kernel constant scale folding).
    fwd2 = make_linear_layer(w_base, b_base, w_prior, b_prior,
                             prior_scale=0.3, posterior_scale=1.7)
    out2 = jax.block_until_ready(fwd2(x, prior_x))
    ref2 = (1.7 * (x @ w_base + b_base)
            + 0.3 * (prior_x @ w_prior + b_prior))[:, None, :]
    assert jnp.allclose(out2, ref2, atol=1e-5, rtol=1e-5)

    # 3) prior_scale <= 0: only basedmodel(x), no scaling, prior never DMA'd.
    fwd3 = make_linear_layer(w_base, b_base, w_prior, b_prior, prior_scale=0.0)
    out3 = jax.block_until_ready(fwd3(x))
    ref3 = (x @ w_base + b_base)[:, None, :]
    assert jnp.allclose(out3, ref3, atol=1e-5, rtol=1e-5)

    # 4) Multi-K-block path (accumulator kernel) via a small tk cap + bias.
    in_big = 256
    k_wb2, k_wp2, k_x2, k_px2, k_b2, k_bp2 = jax.random.split(
        jax.random.PRNGKey(1), 6)
    w_base2 = _xavier_normal(k_wb2, in_big, out_features)
    w_prior2 = _xavier_normal(k_wp2, in_big, out_features)
    b_base2 = 0.1 * jax.random.normal(k_b2, (1, out_features), jnp.float32)
    b_prior2 = 0.1 * jax.random.normal(k_bp2, (1, out_features), jnp.float32)
    x2 = jax.random.normal(k_x2, (batch, in_big), jnp.float32)
    px2 = jax.random.normal(k_px2, (batch, in_big), jnp.float32)
    fwd4 = make_linear_layer(w_base2, b_base2, w_prior2, b_prior2,
                             prior_scale=0.5, posterior_scale=1.0, tk_cap=128)
    out4 = jax.block_until_ready(fwd4(x2, px2))
    ref4 = (1.0 * (x2 @ w_base2 + b_base2)
            + 0.5 * (px2 @ w_prior2 + b_prior2))[:, None, :]
    assert jnp.allclose(out4, ref4, atol=1e-4, rtol=1e-4)

    print("KERNEL_OK")
</pallas_src>

<mosaic_0001>
module attributes {stable_mosaic.version = 11 : i64} {
  func.func @kernel(%arg0: i32, %arg1: i32, %arg2: memref<8x128xf32, #tpu.memory_space<vmem>>, %arg3: memref<8x128xf32, #tpu.memory_space<vmem>>, %arg4: memref<128x128xf32, #tpu.memory_space<vmem>>, %arg5: memref<128x128xf32, #tpu.memory_space<vmem>>, %arg6: memref<1x128xf32, #tpu.memory_space<vmem>>, %arg7: memref<8x128xf32, #tpu.memory_space<vmem>>) attributes {dimension_semantics = [#tpu.dimension_semantics<parallel>, #tpu.dimension_semantics<parallel>], iteration_bounds = array<i64: 1, 1>, scalar_prefetch = 0 : i64, scratch_operands = 0 : i64, tpu.core_type = #tpu.core_type<tc>, window_params = [{transform_indices = @transform_0, window_bounds = array<i64: 8, 128>}, {transform_indices = @transform_1, window_bounds = array<i64: 8, 128>}, {transform_indices = @transform_2, window_bounds = array<i64: 128, 128>}, {transform_indices = @transform_3, window_bounds = array<i64: 128, 128>}, {transform_indices = @transform_4, window_bounds = array<i64: 1, 128>}, {transform_indices = @transform_5, window_bounds = array<i64: 8, 128>}]} {
    %c0 = arith.constant 0 : index
    %c0_0 = arith.constant 0 : index
    %0 = vector.load %arg2[%c0, %c0_0] : memref<8x128xf32, #tpu.memory_space<vmem>>, vector<8x128xf32>
    %c0_1 = arith.constant 0 : index
    %c0_2 = arith.constant 0 : index
    %1 = vector.load %arg4[%c0_1, %c0_2] : memref<128x128xf32, #tpu.memory_space<vmem>>, vector<128x128xf32>
    %cst = arith.constant dense<0.000000e+00> : vector<8x128xf32>
    %2 = tpu.matmul %0, %1, %cst {dimension_numbers = #tpu.dot_dimension_numbers<[1], [0], [0], [1], [0, 0, 1, 1], [], []>} : vector<8x128xf32>, vector<128x128xf32>, vector<8x128xf32> -> vector<8x128xf32>
    %c0_3 = arith.constant 0 : index
    %c0_4 = arith.constant 0 : index
    %3 = vector.load %arg3[%c0_3, %c0_4] : memref<8x128xf32, #tpu.memory_space<vmem>>, vector<8x128xf32>
    %c0_5 = arith.constant 0 : index
    %c0_6 = arith.constant 0 : index
    %4 = vector.load %arg5[%c0_5, %c0_6] : memref<128x128xf32, #tpu.memory_space<vmem>>, vector<128x128xf32>
    %cst_7 = arith.constant dense<0.000000e+00> : vector<8x128xf32>
    %5 = tpu.matmul %3, %4, %cst_7 {dimension_numbers = #tpu.dot_dimension_numbers<[1], [0], [0], [1], [0, 0, 1, 1], [], []>} : vector<8x128xf32>, vector<128x128xf32>, vector<8x128xf32> -> vector<8x128xf32>
    %6 = arith.addf %2, %5 : vector<8x128xf32>
    %c0_8 = arith.constant 0 : index
    %c0_9 = arith.constant 0 : index
    %7 = vector.load %arg6[%c0_8, %c0_9] : memref<1x128xf32, #tpu.memory_space<vmem>>, vector<1x128xf32>
    %8 = vector.broadcast %7 : vector<1x128xf32> to vector<8x128xf32>
    %9 = arith.addf %6, %8 : vector<8x128xf32>
    %c0_10 = arith.constant 0 : index
    %c0_11 = arith.constant 0 : index
    %10 = vector.load %arg7[%c0_10, %c0_11] : memref<8x128xf32, #tpu.memory_space<vmem>>, vector<8x128xf32>
    tpu.vector_store %arg7[%c0_10, %c0_11], %9 {strides = array<i32>} : memref<8x128xf32, #tpu.memory_space<vmem>>, vector<8x128xf32>,
    return
  }
  func.func @transform_0(%arg0: i32, %arg1: i32) -> (i32, i32) {
    %c0_i32 = arith.constant 0 : i32
    %c0_i32_0 = arith.constant 0 : i32
    return %arg0, %c0_i32 : i32, i32
  }
  func.func @transform_1(%arg0: i32, %arg1: i32) -> (i32, i32) {
    %c0_i32 = arith.constant 0 : i32
    %c0_i32_0 = arith.constant 0 : i32
    return %arg0, %c0_i32 : i32, i32
  }
  func.func @transform_2(%arg0: i32, %arg1: i32) -> (i32, i32) {
    %c0_i32 = arith.constant 0 : i32
    %c0_i32_0 = arith.constant 0 : i32
    return %c0_i32, %arg1 : i32, i32
  }
  func.func @transform_3(%arg0: i32, %arg1: i32) -> (i32, i32) {
    %c0_i32 = arith.constant 0 : i32
    %c0_i32_0 = arith.constant 0 : i32
    return %c0_i32, %arg1 : i32, i32
  }
  func.func @transform_4(%arg0: i32, %arg1: i32) -> (i32, i32) {
    %c0_i32 = arith.constant 0 : i32
    %c0_i32_0 = arith.constant 0 : i32
    return %c0_i32, %arg1 : i32, i32
  }
  func.func @transform_5(%arg0: i32, %arg1: i32) -> (i32, i32) {
    %c0_i32 = arith.constant 0 : i32
    return %arg0, %arg1 : i32, i32
  }
}

</mosaic_0001>

<llo_original>
// kernel: tpu_custom_call.1
$region0: #{tpu_custom_call.1}
  #allocation0 [shape = 'u32[]', space=smem, size = 0x4, offset = 0x4, fixed_abs, tag = 'smem constant byte address 0x4 - core index']
  #allocation1 [shape = 'u32[72,128]{1,0:T(1,128)}', space=vmem, size = 0x9000, scoped, tag = 'internal scratch']
  %s0 = inlined_call_operand.hbm [shape: f32[8,128], index: 0, kind: input, shape index: {}]
  %s1 = inlined_call_operand.hbm [shape: f32[8,128], index: 1, kind: input, shape index: {}]
  %s2 = inlined_call_operand.hbm [shape: f32[128,128], index: 2, kind: input, shape index: {}]
  %s3 = inlined_call_operand.hbm [shape: f32[128,128], index: 3, kind: input, shape index: {}]
  %s4 = inlined_call_operand.vmem [shape: f32[1,128], index: 4, kind: input, shape index: {}]
  %s5 = inlined_call_operand.hbm [shape: f32[8,128], index: 5, kind: output, shape index: {}]
  %s6 = sld [smem:[#allocation0]]
  $region46: #{tpu_custom_call.1} parent=0
    _
  %s8 = ssub.s32 1, %s6
  %s9 = scalar_select 0, %s8, %s6
  $region1: #{tpu_custom_call.1} parent=0
    #allocation2 [shape = 'u8[4096]{0}', space=vmem, size = 0x1000, scoped, tag = 'input window, operand 0, single buffered']
    #allocation3 [shape = 's32[1]{0}', space=sflag, size = 0x4, scoped, tag = 'scoped memory for tpu_custom_call.1']
    #allocation4 [shape = 's32[1]{0}', space=sflag, size = 0x4, scoped, tag = 'scoped memory for tpu_custom_call.1']
    #allocation5 [shape = 'u8[4096]{0}', space=vmem, size = 0x1000, scoped, tag = 'input window, operand 1, single buffered']
    #allocation6 [shape = 's32[1]{0}', space=sflag, size = 0x4, scoped, tag = 'scoped memory for tpu_custom_call.1']
    #allocation7 [shape = 'u8[65536]{0}', space=vmem, size = 0x10000, scoped, tag = 'input window, operand 2, single buffered']
    #allocation8 [shape = 'u8[65536]{0}', space=vmem, size = 0x10000, scoped, tag = 'input window, operand 3, single buffered']
    #allocation9 [shape = 's32[1]{0}', space=sflag, size = 0x4, scoped, tag = 'scoped memory for tpu_custom_call.1']
    #allocation10 [shape = 'u8[4096]{0}', space=vmem, size = 0x1000, scoped, tag = 'output window, operand 0, single buffered']
    %10 = vsyncpa [#allocation3], 0
    %11 = vsyncpa [#allocation6], 0
    %12 = vsyncpa [#allocation9], 0
    %13 = vsyncpa [#allocation4], 0
    // Predicated region
    $region2: #{tpu_custom_call.1} parent=1 // pred_check
      _
    $region3: #{tpu_custom_call.1} parent=1 // pred_check_branch
      %15 = sbr.rel (0) target = $region5
    $region4: #{tpu_custom_call.1} parent=1 // pred_region
      %17 = vsyncadd [#allocation3], 0
      %s19 = sshll.u32 %s0, 4
      %s20 = int_to_ptr.hbm [resolvable:$true] %s19
      %s21 = sshll.u32 [#allocation2], 4
      %s22 = int_to_ptr.vmem [resolvable:$true] %s21
      %24 = dma.hbm_to_vmem [thread:$0]  %s20, 128, %s22, [#allocation3]
    $region5: #{tpu_custom_call.1} parent=1 // pred_fallthru
      _
    // Predicated region
    $region6: #{tpu_custom_call.1} parent=1 // pred_check
      _
    $region7: #{tpu_custom_call.1} parent=1 // pred_check_branch
      %26 = sbr.rel (0) target = $region9
    $region8: #{tpu_custom_call.1} parent=1 // pred_region
      %28 = vsyncadd [#allocation6], 0
      %s30 = sshll.u32 %s1, 4
      %s31 = int_to_ptr.hbm [resolvable:$true] %s30
      %s32 = sshll.u32 [#allocation5], 4
      %s33 = int_to_ptr.vmem [resolvable:$true] %s32
      %35 = dma.hbm_to_vmem [thread:$0]  %s31, 128, %s33, [#allocation6]
    $region9: #{tpu_custom_call.1} parent=1 // pred_fallthru
      _
    // Predicated region
    $region10: #{tpu_custom_call.1} parent=1 // pred_check
      _
    $region11: #{tpu_custom_call.1} parent=1 // pred_check_branch
      %37 = sbr.rel (0) target = $region13
    $region12: #{tpu_custom_call.1} parent=1 // pred_region
      %39 = vsyncadd [#allocation6], 0
      %s40 = sshll.u32 %s2, 4
      %s41 = int_to_ptr.hbm [resolvable:$true] %s40
      %s42 = sshll.u32 [#allocation7], 4
      %s43 = int_to_ptr.vmem [resolvable:$true] %s42
      %48 = dma.hbm_to_vmem [thread:$0]  %s41, 2048, %s43, [#allocation6], 128, 128, 8
    $region13: #{tpu_custom_call.1} parent=1 // pred_fallthru
      _
    // Predicated region
    $region14: #{tpu_custom_call.1} parent=1 // pred_check
      _
    $region15: #{tpu_custom_call.1} parent=1 // pred_check_branch
      %50 = sbr.rel (0) target = $region17
    $region16: #{tpu_custom_call.1} parent=1 // pred_region
      %52 = vsyncadd [#allocation9], 0
      %s53 = sshll.u32 %s3, 4
      %s54 = int_to_ptr.hbm [resolvable:$true] %s53
      %s55 = sshll.u32 [#allocation8], 4
      %s56 = int_to_ptr.vmem [resolvable:$true] %s55
      %61 = dma.hbm_to_vmem [thread:$0]  %s54, 2048, %s56, [#allocation9], 128, 128, 8
    $region17: #{tpu_custom_call.1} parent=1 // pred_fallthru
      _
    // Predicated region
    $region18: #{tpu_custom_call.1} parent=1 // pred_check
      _
    $region19: #{tpu_custom_call.1} parent=1 // pred_check_branch
      %63 = sbr.rel (0) target = $region21
    $region20: #{tpu_custom_call.1} parent=1 // pred_region
      _
    $region21: #{tpu_custom_call.1} parent=1 // pred_fallthru
      _
    // Predicated region
    $region22: #{tpu_custom_call.1} parent=1 // pred_check
      _
    $region23: #{tpu_custom_call.1} parent=1 // pred_check_branch
      %65 = sbr.rel (0) target = $region25
    $region24: #{tpu_custom_call.1} parent=1 // pred_region
      %67 = dma.done [#allocation3], 128
    $region25: #{tpu_custom_call.1} parent=1 // pred_fallthru
      _
    // Predicated region
    $region26: #{tpu_custom_call.1} parent=1 // pred_check
      _
    $region27: #{tpu_custom_call.1} parent=1 // pred_check_branch
      %69 = sbr.rel (0) target = $region29
    $region28: #{tpu_custom_call.1} parent=1 // pred_region
      %71 = dma.done [#allocation6], 128
    $region29: #{tpu_custom_call.1} parent=1 // pred_fallthru
      _
    // Predicated region
    $region30: #{tpu_custom_call.1} parent=1 // pred_check
      _
    $region31: #{tpu_custom_call.1} parent=1 // pred_check_branch
      %73 = sbr.rel (0) target = $region33
    $region32: #{tpu_custom_call.1} parent=1 // pred_region
      %75 = dma.done [#allocation6], 2048
    $region33: #{tpu_custom_call.1} parent=1 // pred_fallthru
      _
    // Predicated region
    $region34: #{tpu_custom_call.1} parent=1 // pred_check
      _
    $region35: #{tpu_custom_call.1} parent=1 // pred_check_branch
      %77 = sbr.rel (0) target = $region37
    $region36: #{tpu_custom_call.1} parent=1 // pred_region
      %79 = dma.done [#allocation9], 2048
    $region37: #{tpu_custom_call.1} parent=1 // pred_fallthru
      _
    %v80 = vld [vmem:[#allocation2] sm:$0xff]
    %v81 = vld [vmem:[#allocation7] sm:$0xff]
    %v82 = vld [vmem:[#allocation7 + $0x8] sm:$0xff]
    %v83 = vld [vmem:[#allocation7 + $0x10] sm:$0xff]
    %v84 = vld [vmem:[#allocation7 + $0x18] sm:$0xff]
    %v85 = vld [vmem:[#allocation7 + $0x20] sm:$0xff]
    %v86 = vld [vmem:[#allocation7 + $0x28] sm:$0xff]
    %v87 = vld [vmem:[#allocation7 + $0x30] sm:$0xff]
    %v88 = vld [vmem:[#allocation7 + $0x38] sm:$0xff]
    %v89 = vld [vmem:[#allocation7 + $0x40] sm:$0xff]
    %v90 = vld [vmem:[#allocation7 + $0x48] sm:$0xff]
    %v91 = vld [vmem:[#allocation7 + $0x50] sm:$0xff]
    %v92 = vld [vmem:[#allocation7 + $0x58] sm:$0xff]
    %v93 = vld [vmem:[#allocation7 + $0x60] sm:$0xff]
    %v94 = vld [vmem:[#allocation7 + $0x68] sm:$0xff]
    %v95 = vld [vmem:[#allocation7 + $0x70] sm:$0xff]
    %v96 = vld [vmem:[#allocation7 + $0x78] sm:$0xff]
    %v97 = vld [vmem:[#allocation5] sm:$0xff]
    %v98 = vld [vmem:[#allocation8] sm:$0xff]
    %v99 = vld [vmem:[#allocation8 + $0x8] sm:$0xff]
    %v100 = vld [vmem:[#allocation8 + $0x10] sm:$0xff]
    %v101 = vld [vmem:[#allocation8 + $0x18] sm:$0xff]
    %v102 = vld [vmem:[#allocation8 + $0x20] sm:$0xff]
    %v103 = vld [vmem:[#allocation8 + $0x28] sm:$0xff]
    %v104 = vld [vmem:[#allocation8 + $0x30] sm:$0xff]
    %v105 = vld [vmem:[#allocation8 + $0x38] sm:$0xff]
    %v106 = vld [vmem:[#allocation8 + $0x40] sm:$0xff]
    %v107 = vld [vmem:[#allocation8 + $0x48] sm:$0xff]
    %v108 = vld [vmem:[#allocation8 + $0x50] sm:$0xff]
    %v109 = vld [vmem:[#allocation8 + $0x58] sm:$0xff]
    %v110 = vld [vmem:[#allocation8 + $0x60] sm:$0xff]
    %v111 = vld [vmem:[#allocation8 + $0x68] sm:$0xff]
    %v112 = vld [vmem:[#allocation8 + $0x70] sm:$0xff]
    %v113 = vld [vmem:[#allocation8 + $0x78] sm:$0xff]
    %114 = vmatpush.msra.mxu0 %v113
    %115 = vmatpush.msra.mxu0 %v112
    %116 = vmatpush.msra.mxu0 %v111
    %117 = vmatpush.msra.mxu0 %v110
    %118 = vmatpush.msra.mxu0 %v109
    %119 = vmatpush.msra.mxu0 %v108
    %120 = vmatpush.msra.mxu0 %v107
    %121 = vmatpush.msra.mxu0 %v106
    %122 = vmatpush.msra.mxu0 %v105
    %123 = vmatpush.msra.mxu0 %v104
    %124 = vmatpush.msra.mxu0 %v103
    %125 = vmatpush.msra.mxu0 %v102
    %126 = vmatpush.msra.mxu0 %v101
    %127 = vmatpush.msra.mxu0 %v100
    %128 = vmatpush.msra.mxu0 %v99
    %129 = vmatpush.msra.mxu0 %v98
    %130 = vmatmul.f32.gmra.mxu0 %v97
    %v131 = vpop.f32.mrf.mxu0
    %v132 = vadd.f32 0.0, %v131
    %133 = vdwg.mxu0
    %134 = vmatpush.msra.mxu0 %v96
    %135 = vmatpush.msra.mxu0 %v95
    %136 = vmatpush.msra.mxu0 %v94
    %137 = vmatpush.msra.mxu0 %v93
    %138 = vmatpush.msra.mxu0 %v92
    %139 = vmatpush.msra.mxu0 %v91
    %140 = vmatpush.msra.mxu0 %v90
    %141 = vmatpush.msra.mxu0 %v89
    %142 = vmatpush.msra.mxu0 %v88
    %143 = vmatpush.msra.mxu0 %v87
    %144 = vmatpush.msra.mxu0 %v86
    %145 = vmatpush.msra.mxu0 %v85
    %146 = vmatpush.msra.mxu0 %v84
    %147 = vmatpush.msra.mxu0 %v83
    %148 = vmatpush.msra.mxu0 %v82
    %149 = vmatpush.msra.mxu0 %v81
    %150 = vmatmul.f32.gmra.mxu0 %v80
    %v151 = vpop.f32.mrf.mxu0
    %v152 = vadd.f32 %v132, %v151
    %153 = vdwg.mxu0
    %v154 = vld [vmem:[%s4] sm:$0x1]
    %v156 = vperm.slane %v154, 0
    %v158 = vadd.f32 %v152, %v156
    %159 = vst [vmem:[#allocation10] sm:$0xff] %v158
    // Predicated region
    $region38: #{tpu_custom_call.1} parent=1 // pred_check
      _
    $region39: #{tpu_custom_call.1} parent=1 // pred_check_branch
      %161 = sbr.rel (0) target = $region41
    $region40: #{tpu_custom_call.1} parent=1 // pred_region
      %163 = vsyncadd [#allocation4], 0
      %s165 = sshll.u32 [#allocation10], 4
      %s166 = int_to_ptr.vmem [resolvable:$true] %s165
      %s167 = sshll.u32 %s5, 4
      %s168 = int_to_ptr.hbm [resolvable:$true] %s167
      %170 = dma.vmem_to_hbm [thread:$0]  %s166, 128, %s168, [#allocation4]
    $region41: #{tpu_custom_call.1} parent=1 // pred_fallthru
      _
    // Predicated region
    $region42: #{tpu_custom_call.1} parent=1 // pred_check
      _
    $region43: #{tpu_custom_call.1} parent=1 // pred_check_branch
      %172 = sbr.rel (0) target = $region45
    $region44: #{tpu_custom_call.1} parent=1 // pred_region
      %174 = dma.done [#allocation4], 128
    $region45: #{tpu_custom_call.1} parent=1 // pred_fallthru
      _
    %175 = vsyncpa [#allocation3], 1
    %176 = vsyncpa [#allocation6], 1
    %177 = vsyncpa [#allocation9], 1
    %178 = vsyncpa [#allocation4], 1

</llo_original>
